<compile_context>
chip_gen: v7x
topology: tpu7x:2x2x1
jax: 0.10.0
libtpu: 0.0.40
codegen_flags: <defaults>
</compile_context>

<pallas_src>
import functools

import jax
import jax.numpy as jnp
from jax.experimental import pallas as pl
from jax.experimental.pallas import tpu as pltpu

_IGNORE_INDEX = -100  # nn.CrossEntropyLoss default


def _round_up(x, m):
    return ((x + m - 1) // m) * m


def _vmem_limit_bytes():
    """Per-generation VMEM budget: ~3/4 of physical scoped VMEM.
    => ~96 MiB on v5e/v6e (128 MiB), ~48 MiB on v7x (64 MiB/TC)."""
    try:
        cap = int(pltpu.get_tpu_info().vmem_capacity_bytes)
    except Exception:  # conservative fallback (v7x per-TC capacity)
        cap = 64 << 20
    return max(32 << 20, (cap * 3) // 4)


def _choose_tile_n(n_rows, n_cls, itemsize, n_streams, vmem_limit):
    """Byte-based row-tile choice (no row-count cap).

    Budget per grid step ~= n_streams double-buffered input tiles plus ~3
    tile-sized f32 temporaries, all within the per-generation vmem_limit.
    Soft path (2 streams) => ~vmem_limit/7 per stream; hard path (1 wide
    stream) => ~vmem_limit/5, i.e. bigger tiles / fewer grid steps."""
    target_bytes = max(1 << 20, vmem_limit // (2 * n_streams + 3))
    t = max(8, target_bytes // max(1, n_cls * itemsize))
    if n_rows >= 16:
        # Keep grid_n >= 2 so the "parallel" axis can shard across both v7x
        # TensorCores (costs one extra ~0.35us step on single-TC chips).
        t = min(t, _round_up(pl.cdiv(n_rows, 2), 8))
    if t > n_rows:
        t = _round_up(n_rows, 8)
    # Sublane-friendly row count; multiples of 128 also make the (1, tile_n)
    # per-row-loss output block lane-dense.
    t = (t // 128) * 128 if t >= 128 else max(8, (t // 8) * 8)
    return t


def _compiler_params(vmem_limit):
    return pltpu.CompilerParams(
        dimension_semantics=("parallel",),  # tiles independent -> both TCs usable
        vmem_limit_bytes=vmem_limit,
    )


def _soft_ce_kernel(n_rows, pred_ref, tgt_ref, out_ref):
    """out_ref[0, r] = sum_c(-t_r * log_softmax(p_r)); 0 for padded rows.

    No input-side masking: padded-row garbage stays confined to its own row
    (all reductions are axis=-1) and is zeroed by the final select."""
    i = pl.program_id(0)
    tile_n = pred_ref.shape[0]

    p = pred_ref[...].astype(jnp.float32)
    t = tgt_ref[...].astype(jnp.float32)

    m = jnp.max(p, axis=-1, keepdims=True)
    lse = m + jnp.log(jnp.sum(jnp.exp(p - m), axis=-1, keepdims=True))
    # -t * log_softmax(p) = t * (lse - p); fused into the lane reduction
    per_row = jnp.sum(t * (lse - p), axis=-1)                  # (tile_n,)

    row = i * tile_n + jax.lax.broadcasted_iota(jnp.int32, (tile_n, 1), 0)
    valid = row < n_rows                                       # (tile_n, 1)
    out_ref[0, :] = jnp.where(valid[:, 0], per_row, 0.0)


def _hard_ce_kernel(n_rows, pred_ref, tgt_ref, out_ref):
    """out_ref[0, r] = lse(p_r) - p_r[target_r]; 0 for padded or ignore_index rows
    (the mean denominator is handled in the wrapper)."""
    i = pl.program_id(0)
    tile_n, n_cls = pred_ref.shape

    p = pred_ref[...].astype(jnp.float32)
    t = tgt_ref[...]                                           # (tile_n, 1) int32

    m = jnp.max(p, axis=-1, keepdims=True)
    lse = m + jnp.log(jnp.sum(jnp.exp(p - m), axis=-1, keepdims=True))
    col = jax.lax.broadcasted_iota(jnp.int32, (tile_n, n_cls), 1)
    picked = jnp.sum(jnp.where(col == t, p, 0.0), axis=-1, keepdims=True)

    row = i * tile_n + jax.lax.broadcasted_iota(jnp.int32, (tile_n, 1), 0)
    keep = (row < n_rows) & (t != _IGNORE_INDEX)               # (tile_n, 1)
    out_ref[0, :] = jnp.where(keep[:, 0], (lse - picked)[:, 0], 0.0)


def cross_entropy_with_soft_targets(pred, target, dim=-1):
    """Forward pass of CrossEntropyWithSoftTargets. Returns a () float32 scalar."""
    # TODO(synk): very large class counts (C >~ 32k) would additionally need a grid
    # axis over C with an online logsumexp; only row tiling is implemented here.
    vmem_limit = _vmem_limit_bytes()
    cp = _compiler_params(vmem_limit)

    if pred.shape == target.shape:
        # --- soft-target path ---
        d = dim % pred.ndim
        if d != pred.ndim - 1:
            # TODO(synk): this transpose is an extra HBM read+write of both tensors;
            # a BlockSpec/index_map over the original layout would avoid it.
            pred = jnp.moveaxis(pred, d, -1)
            target = jnp.moveaxis(target, d, -1)
        n_cls = pred.shape[-1]
        p2 = pred.reshape(-1, n_cls)
        t2 = target.reshape(-1, n_cls)        # native dtype; cast happens in-kernel
        n_rows = p2.shape[0]
        tile_n = _choose_tile_n(n_rows, n_cls, p2.dtype.itemsize,
                                n_streams=2, vmem_limit=vmem_limit)
        grid_n = pl.cdiv(n_rows, tile_n)
        # TODO(synk): if a v7x profile shows exposed DMA at step boundaries, add
        # pipeline_mode=pl.Buffered(3) on the input BlockSpecs within the budget.
        out = pl.pallas_call(
            functools.partial(_soft_ce_kernel, n_rows),
            out_shape=jax.ShapeDtypeStruct((grid_n, tile_n), jnp.float32),
            grid=(grid_n,),
            in_specs=[
                pl.BlockSpec((tile_n, n_cls), lambda i: (i, 0)),
                pl.BlockSpec((tile_n, n_cls), lambda i: (i, 0)),
            ],
            out_specs=pl.BlockSpec((1, tile_n), lambda i: (i, 0)),
            compiler_params=cp,
        )(p2, t2)
        return jnp.sum(out) / jnp.float32(n_rows)
    else:
        # --- hard-target path: nn.CrossEntropyLoss() with integer class indices ---
        assert pred.shape[0] == target.shape[0]
        # TODO(synk): only the [N, C] pred / [N] target form of nn.CrossEntropyLoss
        # is implemented; higher-rank ([N, C, d1, ...]) inputs are not.
        assert pred.ndim == 2 and target.ndim == 1
        n_rows, n_cls = pred.shape
        tgt = target.astype(jnp.int32).reshape(n_rows, 1)
        # Only pred is a wide HBM stream here -> larger tile (n_streams=1).
        tile_n = _choose_tile_n(n_rows, n_cls, pred.dtype.itemsize,
                                n_streams=1, vmem_limit=vmem_limit)
        grid_n = pl.cdiv(n_rows, tile_n)
        out = pl.pallas_call(
            functools.partial(_hard_ce_kernel, n_rows),
            out_shape=jax.ShapeDtypeStruct((grid_n, tile_n), jnp.float32),
            grid=(grid_n,),
            in_specs=[
                pl.BlockSpec((tile_n, n_cls), lambda i: (i, 0)),
                pl.BlockSpec((tile_n, 1), lambda i: (i, 0)),
            ],
            out_specs=pl.BlockSpec((1, tile_n), lambda i: (i, 0)),
            compiler_params=cp,
        )(pred, tgt)
        # mean over non-ignored rows (nn.CrossEntropyLoss default ignore_index=-100)
        denom = jnp.sum((target != _IGNORE_INDEX).astype(jnp.float32))
        return jnp.sum(out) / denom


if __name__ == "__main__":
    key = jax.random.PRNGKey(0)
    k1, k2, k3, k4, k5, k6 = jax.random.split(key, 6)

    # --- test 1: small aligned shapes, soft + hard paths ---
    N, C = 8, 128
    pred = jax.random.normal(k1, (N, C), dtype=jnp.float32)

    soft_tgt = jax.nn.softmax(jax.random.normal(k2, (N, C), dtype=jnp.float32), axis=-1)
    loss_soft = cross_entropy_with_soft_targets(pred, soft_tgt)
    jax.block_until_ready(loss_soft)
    ref_soft = jnp.mean(jnp.sum(-soft_tgt * jax.nn.log_softmax(pred, axis=-1), axis=-1))
    assert jnp.allclose(loss_soft, ref_soft, rtol=1e-5, atol=1e-5)

    hard_tgt = jax.random.randint(k3, (N,), 0, C, dtype=jnp.int32)
    loss_hard = cross_entropy_with_soft_targets(pred, hard_tgt)
    jax.block_until_ready(loss_hard)
    ref_hard = jnp.mean(jax.nn.logsumexp(pred, axis=-1) - pred[jnp.arange(N), hard_tgt])
    assert jnp.allclose(loss_hard, ref_hard, rtol=1e-5, atol=1e-5)

    # --- test 2: ragged shapes (N not multiple of 8, C not multiple of 128) to
    # exercise remainder-row masking with unmasked inputs, plus ignore_index=-100
    # on the hard path and the grid_n >= 2 split ---
    N2, C2 = 37, 160
    pred2 = jax.random.normal(k4, (N2, C2), dtype=jnp.float32)

    soft_tgt2 = jax.nn.softmax(jax.random.normal(k5, (N2, C2), dtype=jnp.float32), axis=-1)
    loss_soft2 = cross_entropy_with_soft_targets(pred2, soft_tgt2)
    jax.block_until_ready(loss_soft2)
    ref_soft2 = jnp.mean(jnp.sum(-soft_tgt2 * jax.nn.log_softmax(pred2, axis=-1), axis=-1))
    assert jnp.allclose(loss_soft2, ref_soft2, rtol=1e-5, atol=1e-5)

    hard_tgt2 = jax.random.randint(k6, (N2,), 0, C2, dtype=jnp.int32)
    hard_tgt2 = hard_tgt2.at[3].set(-100)   # ignored row
    loss_hard2 = cross_entropy_with_soft_targets(pred2, hard_tgt2)
    jax.block_until_ready(loss_hard2)
    keep = hard_tgt2 != -100
    nll2 = jax.nn.logsumexp(pred2, axis=-1) - pred2[
        jnp.arange(N2), jnp.where(keep, hard_tgt2, 0)
    ]
    ref_hard2 = jnp.sum(jnp.where(keep, nll2, 0.0)) / jnp.sum(keep.astype(jnp.float32))
    assert jnp.allclose(loss_hard2, ref_hard2, rtol=1e-5, atol=1e-5)

    print("KERNEL_OK")
</pallas_src>

<mosaic_0001>
module attributes {stable_mosaic.version = 11 : i64} {
  func.func @_soft_ce_kernel(%arg0: i32, %arg1: memref<8x128xf32, #tpu.memory_space<vmem>>, %arg2: memref<8x128xf32, #tpu.memory_space<vmem>>, %arg3: memref<1x8xf32, #tpu.memory_space<vmem>>) attributes {dimension_semantics = [#tpu.dimension_semantics<parallel>], iteration_bounds = array<i64: 1>, scalar_prefetch = 0 : i64, scratch_operands = 0 : i64, tpu.core_type = #tpu.core_type<tc>, window_params = [{transform_indices = @transform_0, window_bounds = array<i64: 8, 128>}, {transform_indices = @transform_1, window_bounds = array<i64: 8, 128>}, {transform_indices = @transform_2, window_bounds = array<i64: 1, 8>}]} {
    %c0 = arith.constant 0 : index
    %c0_0 = arith.constant 0 : index
    %0 = vector.load %arg1[%c0, %c0_0] : memref<8x128xf32, #tpu.memory_space<vmem>>, vector<8x128xf32>
    %c0_1 = arith.constant 0 : index
    %c0_2 = arith.constant 0 : index
    %1 = vector.load %arg2[%c0_1, %c0_2] : memref<8x128xf32, #tpu.memory_space<vmem>>, vector<8x128xf32>
    %cst = arith.constant dense<0xFF800000> : vector<8xf32>
    %2 = vector.multi_reduction <maximumf>, %0, %cst [1] : vector<8x128xf32> to vector<8xf32>
    %3 = vector.shape_cast %2 : vector<8xf32> to vector<8x1xf32>
    %4 = vector.broadcast %3 : vector<8x1xf32> to vector<8x128xf32>
    %5 = arith.subf %0, %4 : vector<8x128xf32>
    %6 = math.exp %5 : vector<8x128xf32>
    %cst_3 = arith.constant dense<0.000000e+00> : vector<8xf32>
    %7 = vector.multi_reduction <add>, %6, %cst_3 [1] : vector<8x128xf32> to vector<8xf32>
    %8 = vector.shape_cast %7 : vector<8xf32> to vector<8x1xf32>
    %9 = math.log %8 : vector<8x1xf32>
    %10 = arith.addf %3, %9 : vector<8x1xf32>
    %11 = vector.broadcast %10 : vector<8x1xf32> to vector<8x128xf32>
    %12 = arith.subf %11, %0 : vector<8x128xf32>
    %13 = arith.mulf %1, %12 : vector<8x128xf32>
    %cst_4 = arith.constant dense<0.000000e+00> : vector<8xf32>
    %14 = vector.multi_reduction <add>, %13, %cst_4 [1] : vector<8x128xf32> to vector<8xf32>
    %c8_i32 = arith.constant 8 : i32
    %15 = arith.muli %arg0, %c8_i32 : i32
    %16 = tpu.iota {dimensions = array<i32: 0>} : vector<8x1xi32>
    %17 = vector.broadcast %15 : i32 to vector<8x1xi32>
    %18 = arith.addi %17, %16 : vector<8x1xi32>
    %c8_i32_5 = arith.constant 8 : i32
    %19 = vector.broadcast %c8_i32_5 : i32 to vector<8x1xi32>
    %20 = arith.cmpi slt, %18, %19 : vector<8x1xi32>
    %21 = vector.shape_cast %20 : vector<8x1xi1> to vector<8xi1>
    %cst_6 = arith.constant 0.000000e+00 : f32
    %22 = vector.broadcast %cst_6 : f32 to vector<8xf32>
    %23 = arith.select %21, %14, %22 : vector<8xi1>, vector<8xf32>
    %c0_7 = arith.constant 0 : index
    %c0_8 = arith.constant 0 : index
    %24 = vector.load %arg3[%c0_7, %c0_8] : memref<1x8xf32, #tpu.memory_space<vmem>>, vector<1x8xf32>
    %25 = vector.shape_cast %24 : vector<1x8xf32> to vector<8xf32>
    %26 = vector.shape_cast %23 : vector<8xf32> to vector<1x8xf32>
    tpu.vector_store %arg3[%c0_7, %c0_8], %26 {strides = array<i32>} : memref<1x8xf32, #tpu.memory_space<vmem>>, vector<1x8xf32>,
    return
  }
  func.func @transform_0(%arg0: i32) -> (i32, i32) {
    %c0_i32 = arith.constant 0 : i32
    %c0_i32_0 = arith.constant 0 : i32
    return %arg0, %c0_i32 : i32, i32
  }
  func.func @transform_1(%arg0: i32) -> (i32, i32) {
    %c0_i32 = arith.constant 0 : i32
    %c0_i32_0 = arith.constant 0 : i32
    return %arg0, %c0_i32 : i32, i32
  }
  func.func @transform_2(%arg0: i32) -> (i32, i32) {
    %c0_i32 = arith.constant 0 : i32
    %c0_i32_0 = arith.constant 0 : i32
    return %arg0, %c0_i32 : i32, i32
  }
}

</mosaic_0001>

<llo_original>
// kernel: tpu_custom_call.1
$region0: #{tpu_custom_call.1}
  #allocation0 [shape = 'u32[]', space=smem, size = 0x4, offset = 0x4, fixed_abs, tag = 'smem constant byte address 0x4 - core index']
  #allocation1 [shape = 'u32[144,128]{1,0:T(1,128)}', space=vmem, size = 0x12000, scoped, tag = 'internal scratch']
  %s0 = inlined_call_operand.hbm [shape: f32[8,128], index: 0, kind: input, shape index: {}]
  %s1 = inlined_call_operand.hbm [shape: f32[8,128], index: 1, kind: input, shape index: {}]
  %s2 = inlined_call_operand.hbm [shape: f32[1,8], index: 2, kind: output, shape index: {}]
  %s3 = sld [smem:[#allocation0]]
  $region26: #{tpu_custom_call.1} parent=0
    _
  %s5 = ssub.s32 1, %s3
  %s6 = scalar_select 0, %s5, %s3
  $region1: #{tpu_custom_call.1} parent=0
    #allocation2 [shape = 'u8[4096]{0}', space=vmem, size = 0x1000, scoped, tag = 'input window, operand 0, single buffered']
    #allocation3 [shape = 's32[1]{0}', space=sflag, size = 0x4, scoped, tag = 'scoped memory for tpu_custom_call.1']
    #allocation4 [shape = 's32[1]{0}', space=sflag, size = 0x4, scoped, tag = 'scoped memory for tpu_custom_call.1']
    #allocation5 [shape = 'u8[4096]{0}', space=vmem, size = 0x1000, scoped, tag = 'input window, operand 1, single buffered']
    #allocation6 [shape = 's32[1]{0}', space=sflag, size = 0x4, scoped, tag = 'scoped memory for tpu_custom_call.1']
    #allocation7 [shape = 'u8[512]{0}', space=vmem, size = 0x400, scoped, tag = 'output window, operand 0, single buffered']
    %7 = vsyncpa [#allocation3], 0
    %8 = vsyncpa [#allocation6], 0
    %9 = vsyncpa [#allocation4], 0
    // Predicated region
    $region2: #{tpu_custom_call.1} parent=1 // pred_check
      _
    $region3: #{tpu_custom_call.1} parent=1 // pred_check_branch
      %11 = sbr.rel (0) target = $region5
    $region4: #{tpu_custom_call.1} parent=1 // pred_region
      %s13 = ssub.s32 128, 128
      %14 = vsyncadd [#allocation3], %s13
      %s16 = sshll.u32 [#allocation2], 4
      %s17 = int_to_ptr.vmem [resolvable:$true] %s16
      %19 = dma.hbm_to_vmem [thread:$0]  %s0, 128, %s17, [#allocation3]
    $region5: #{tpu_custom_call.1} parent=1 // pred_fallthru
      _
    // Predicated region
    $region6: #{tpu_custom_call.1} parent=1 // pred_check
      _
    $region7: #{tpu_custom_call.1} parent=1 // pred_check_branch
      %21 = sbr.rel (0) target = $region9
    $region8: #{tpu_custom_call.1} parent=1 // pred_region
      %s23 = ssub.s32 128, 128
      %24 = vsyncadd [#allocation6], %s23
      %s26 = sshll.u32 [#allocation5], 4
      %s27 = int_to_ptr.vmem [resolvable:$true] %s26
      %29 = dma.hbm_to_vmem [thread:$0]  %s1, 128, %s27, [#allocation6]
    $region9: #{tpu_custom_call.1} parent=1 // pred_fallthru
      _
    // Predicated region
    $region10: #{tpu_custom_call.1} parent=1 // pred_check
      _
    $region11: #{tpu_custom_call.1} parent=1 // pred_check_branch
      %31 = sbr.rel (0) target = $region13
    $region12: #{tpu_custom_call.1} parent=1 // pred_region
      %32 = dma.done [#allocation3], 128
    $region13: #{tpu_custom_call.1} parent=1 // pred_fallthru
      _
    // Predicated region
    $region14: #{tpu_custom_call.1} parent=1 // pred_check
      _
    $region15: #{tpu_custom_call.1} parent=1 // pred_check_branch
      %34 = sbr.rel (0) target = $region17
    $region16: #{tpu_custom_call.1} parent=1 // pred_region
      %35 = dma.done [#allocation6], 128
    $region17: #{tpu_custom_call.1} parent=1 // pred_fallthru
      _
    %v36 = vld [vmem:[#allocation2] sm:$0xff]
    %v37 = vld [vmem:[#allocation5] sm:$0xff]
    %38 = vmax.xlane.f32.xlu0 %v36
    %v39 = vpop.xlane.xlu0 %38
    %v40 = vsub.f32 %v36, %v39
    %v41 = vmul.f32 %v40, 1.442695
    %v42 = vpow.pop %v41
    %43 = vadd.xlane.f32.xlu0 %v42
    %v44 = vpop.xlane.xlu0 %43
    %v45 = vlog2.pop %v44
    %v46 = vmul.f32 %v45, 0.6931472
    %v47 = vadd.f32 %v39, %v46
    %v48 = vsub.f32 %v47, %v36
    %v49 = vmul.f32 %v37, %v48
    %50 = vadd.xlane.f32.xlu0 %v49
    %v51 = vpop.xlane.xlu0 %50
    %s52 = smul.u32 0, 8
    %v53 = vlaneseq
    %v54 = vshrl.u32 %v53, 7
    %v55 = vstv %s52
    %v56 = vadd.s32 %v55, %v54
    %vm57 = vcmp.lt.s32.totalorder %v56, 8
    %v58 = vsel %vm57, %v51, 0.0
    %v60 = vlaneseq
    %v61 = vand.u32 %v60, 127
    %v62 = vlaneseq
    %v63 = vshrl.u32 %v62, 7
    %v64 = vsub.s32 %v61, %v63
    %v65 = vrot.slane %v58, %v64
    %vm67 = vcmask 57344
    %68 = vst.msk [vmem:[#allocation7] sm:$0x1] %vm67, %v65
    // Predicated region
    $region18: #{tpu_custom_call.1} parent=1 // pred_check
      _
    $region19: #{tpu_custom_call.1} parent=1 // pred_check_branch
      %70 = sbr.rel (0) target = $region21
    $region20: #{tpu_custom_call.1} parent=1 // pred_region
      %s72 = ssub.s32 16, 16
      %73 = vsyncadd [#allocation4], %s72
      %s75 = sshll.u32 [#allocation7], 4
      %s76 = int_to_ptr.vmem [resolvable:$true] %s75
      %78 = dma.vmem_to_hbm [thread:$0]  %s76, 16, %s2, [#allocation4]
    $region21: #{tpu_custom_call.1} parent=1 // pred_fallthru
      _
    // Predicated region
    $region22: #{tpu_custom_call.1} parent=1 // pred_check
      _
    $region23: #{tpu_custom_call.1} parent=1 // pred_check_branch
      %80 = sbr.rel (0) target = $region25
    $region24: #{tpu_custom_call.1} parent=1 // pred_region
      %81 = dma.done [#allocation4], 16
    $region25: #{tpu_custom_call.1} parent=1 // pred_fallthru
      _
    %82 = vsyncpa [#allocation3], 1
    %83 = vsyncpa [#allocation6], 1
    %84 = vsyncpa [#allocation4], 1

</llo_original>
